<compile_context>
chip_gen: v6e
topology: v6e:2x2x1
jax: 0.10.0
libtpu: 0.0.40
codegen_flags: <defaults>
</compile_context>

<pallas_src>
import functools
import math

import jax
import jax.numpy as jnp
from jax.experimental import pallas as pl
from jax.experimental.pallas import tpu as pltpu

_LANE = 128
_MIB = 1024 * 1024


def _round_up(n, m):
    return ((n + m - 1) // m) * m


def _vnt_matmul_kernel(x_ref, w_ref, o_ref):
    # One MXU matmul per grid step.  The weight BlockSpec returns the same
    # block index every step, so it stays resident; only x / out row tiles
    # stream through HBM<->VMEM.
    o_ref[...] = jnp.dot(
        x_ref[...], w_ref[...], preferred_element_type=jnp.float32
    ).astype(o_ref.dtype)


def _physical_vmem_bytes():
    # Trace-time hardware query; fall back to the smallest per-TC VMEM (v7x).
    try:
        info = pltpu.get_tpu_info()
        return int(getattr(info, "vmem_capacity_bytes", 64 * _MIB))
    except Exception:
        return 64 * _MIB


def _pallas_rows_matmul(x2d, w):
    """x2d: [M, K] @ w: [K, N] -> [M, N] via a row-tiled Pallas matmul."""
    m_rows, k = x2d.shape
    n_out = w.shape[1]
    dtype = x2d.dtype
    itemsize = jnp.dtype(dtype).itemsize
    sub = max(8, 32 // itemsize)  # sublane multiple: f32 -> 8, bf16 -> 16, i8 -> 32

    # --- VMEM-padded per-buffer sizes (last dim pads to 128 lanes,
    #     second-to-last to the dtype sublane multiple). ---
    x_row_bytes = _round_up(k, _LANE) * itemsize
    o_row_bytes = _round_up(n_out, _LANE) * itemsize
    w_bytes = _round_up(k, sub) * _round_up(n_out, _LANE) * itemsize

    # --- Generation-aware budget: grow the tile to fill VMEM.  Keep the whole
    #     double-buffered pipeline at <= min(physical/2, 32 MiB). ---
    phys = _physical_vmem_bytes()
    budget = min(phys // 2, 32 * _MIB)
    avail = max(budget - 2 * w_bytes, 2 * sub * (x_row_bytes + o_row_bytes))
    tb = avail // (2 * (x_row_bytes + o_row_bytes))
    tb = max(sub, (tb // sub) * sub)

    if m_rows <= tb:
        if m_rows >= 2 * sub:
            # Split a single-tile problem into two steps so both v7x
            # TensorCores get work under dimension_semantics=("parallel",).
            tm = _round_up((m_rows + 1) // 2, sub)
        else:
            tm = m_rows  # block equal to the full dim is always legal
    else:
        tm = tb

    grid = (pl.cdiv(m_rows, tm),)

    # Actual scoped-VMEM need (x/out double-buffered, weight conservatively 2x)
    # plus headroom.  Raising past the per-generation default (v5e 16 MiB) is
    # safe; cap well under physical VMEM.
    vmem_need = 2 * tm * (x_row_bytes + o_row_bytes) + 2 * w_bytes
    vmem_limit = int(min(phys * 3 // 4, max(16 * _MIB, vmem_need + 2 * _MIB)))

    cost = pl.CostEstimate(
        flops=2 * m_rows * k * n_out,
        transcendentals=0,
        bytes_accessed=m_rows * (k + n_out) * itemsize + k * n_out * itemsize,
    )

    return pl.pallas_call(
        _vnt_matmul_kernel,
        out_shape=jax.ShapeDtypeStruct((m_rows, n_out), dtype),
        grid_spec=pltpu.PrefetchScalarGridSpec(
            num_scalar_prefetch=0,
            grid=grid,
            in_specs=[
                pl.BlockSpec((tm, k), lambda i: (i, 0)),
                pl.BlockSpec((k, n_out), lambda i: (0, 0)),  # weight: resident
            ],
            out_specs=pl.BlockSpec((tm, n_out), lambda i: (i, 0)),
        ),
        compiler_params=pltpu.CompilerParams(
            dimension_semantics=("parallel",),  # row-parallel across TCs
            vmem_limit_bytes=vmem_limit,
        ),
        cost_estimate=cost,
    )(x2d, w)


@functools.partial(jax.jit, static_argnames=("normalize",))
def vnt_linear(x, weight, normalize=True):
    """VNTLinear forward: matmul(x, softmax(weight, axis=0)).

    x: [..., in_channels]; weight: [in_channels, out_channels].
    """
    cin, cout = weight.shape
    lead_shape = x.shape[:-1]
    m = 1
    for d in lead_shape:
        m *= d
    x2d = x.reshape(m, cin)

    # --- Hoisted weight preprocessing (once, outside the grid loop, in f32). ---
    w = weight.astype(jnp.float32)
    if normalize:
        w = jax.nn.softmax(w, axis=0)  # softmax over in_channels
    w = w.astype(x.dtype)

    # --- Lane-dense fold: pack g consecutive rows into one "slab" row and use
    # a block-diagonal weight, so both the x tile (K = g*Cin) and the output
    # tile (N = g*Cout) are >= 128 lanes wide: unmasked vld/vst, full vregs,
    # full-depth MXU passes.  Exact: off-diagonal blocks are zero. ---
    g0 = 128 // math.gcd(cout, 128)
    g = g0 * max(1, -(-128 // (g0 * cin)))  # smallest multiple of g0 with g*Cin >= 128
    g = min(g, 16)
    if g <= 1 or m < g:
        g = 1

    if g > 1:
        w_fold = jnp.kron(jnp.eye(g, dtype=w.dtype), w)  # (g*Cin, g*Cout) block-diag
        m_bulk = (m // g) * g
        bulk = _pallas_rows_matmul(
            x2d[:m_bulk].reshape(m_bulk // g, g * cin), w_fold
        ).reshape(m_bulk, cout)
        if m_bulk < m:
            # <g leftover rows: tiny plain matmul instead of dropping the fold
            # (which would force masked 32-lane stores for the entire output).
            rem = jnp.dot(x2d[m_bulk:], w, preferred_element_type=jnp.float32)
            out2d = jnp.concatenate([bulk, rem.astype(x.dtype)], axis=0)
        else:
            out2d = bulk
    else:
        out2d = _pallas_rows_matmul(x2d, w)

    return out2d.reshape(*lead_shape, cout)


def init_vnt_linear_params(key, in_channels, out_channels):
    # torch.rand -> uniform [0,1); then softmax over dim=1 (as in __init__).
    w = jax.random.uniform(key, (in_channels, out_channels), dtype=jnp.float32)
    w = jax.nn.softmax(w, axis=1)
    return w


if __name__ == "__main__":
    key = jax.random.PRNGKey(0)
    k_w, k_x = jax.random.split(key)

    B, N, C_IN, C_OUT = 2, 8, 16, 32
    # x: [B, N_samples, 3, N_feat] with N_feat == in_channels (contraction axis).
    x = jax.random.normal(k_x, (B, N, 3, C_IN), dtype=jnp.float32)
    weight = init_vnt_linear_params(k_w, C_IN, C_OUT)

    out = vnt_linear(x, weight)
    out = jax.block_until_ready(out)

    # Reference (plain JAX) check of the forward semantics.
    ref = jnp.matmul(x, jax.nn.softmax(weight, axis=0))
    assert out.shape == (B, N, 3, C_OUT), out.shape
    assert jnp.allclose(out, ref, atol=1e-5, rtol=1e-5), float(
        jnp.max(jnp.abs(out - ref))
    )

    print("KERNEL_OK")
</pallas_src>

<mosaic_0001>
module attributes {stable_mosaic.version = 11 : i64} {
  func.func @_vnt_matmul_kernel(%arg0: i32, %arg1: memref<6x128xf32, #tpu.memory_space<vmem>>, %arg2: memref<128x256xf32, #tpu.memory_space<vmem>>, %arg3: memref<6x256xf32, #tpu.memory_space<vmem>>) attributes {dimension_semantics = [#tpu.dimension_semantics<parallel>], iteration_bounds = array<i64: 1>, scalar_prefetch = 0 : i64, scratch_operands = 0 : i64, tpu.core_type = #tpu.core_type<tc>, window_params = [{transform_indices = @transform_0, window_bounds = array<i64: 6, 128>}, {pipeline_mode = #tpu.pipeline_mode<synchronous>, transform_indices = @transform_1, window_bounds = array<i64: 128, 256>}, {transform_indices = @transform_2, window_bounds = array<i64: 6, 256>}]} {
    %c0 = arith.constant 0 : index
    %c0_0 = arith.constant 0 : index
    %0 = vector.load %arg1[%c0, %c0_0] : memref<6x128xf32, #tpu.memory_space<vmem>>, vector<6x128xf32>
    %c0_1 = arith.constant 0 : index
    %c0_2 = arith.constant 0 : index
    %1 = vector.load %arg2[%c0_1, %c0_2] : memref<128x256xf32, #tpu.memory_space<vmem>>, vector<128x256xf32>
    %cst = arith.constant dense<0.000000e+00> : vector<6x256xf32>
    %2 = tpu.matmul %0, %1, %cst {dimension_numbers = #tpu.dot_dimension_numbers<[1], [0], [0], [1], [0, 0, 1, 1], [], []>} : vector<6x128xf32>, vector<128x256xf32>, vector<6x256xf32> -> vector<6x256xf32>
    %c0_3 = arith.constant 0 : index
    %c0_4 = arith.constant 0 : index
    %3 = vector.load %arg3[%c0_3, %c0_4] : memref<6x256xf32, #tpu.memory_space<vmem>>, vector<6x256xf32>
    tpu.vector_store %arg3[%c0_3, %c0_4], %2 {strides = array<i32>} : memref<6x256xf32, #tpu.memory_space<vmem>>, vector<6x256xf32>,
    return
  }
  func.func @transform_0(%arg0: i32) -> (i32, i32) {
    %c0_i32 = arith.constant 0 : i32
    %c0_i32_0 = arith.constant 0 : i32
    return %arg0, %c0_i32 : i32, i32
  }
  func.func @transform_1(%arg0: i32) -> (i32, i32) {
    %c0_i32 = arith.constant 0 : i32
    %c0_i32_0 = arith.constant 0 : i32
    %c0_i32_1 = arith.constant 0 : i32
    return %c0_i32, %c0_i32_0 : i32, i32
  }
  func.func @transform_2(%arg0: i32) -> (i32, i32) {
    %c0_i32 = arith.constant 0 : i32
    %c0_i32_0 = arith.constant 0 : i32
    return %arg0, %c0_i32 : i32, i32
  }
}

</mosaic_0001>

<llo_original>
// kernel: vnt_linear.1
$region0: #{vnt_linear.1}
  #allocation0 [shape = 'u32[]', space=smem, size = 0x4, offset = 0x4, fixed_abs, tag = 'smem constant byte address 0x4 - core index']
  #allocation1 [shape = 'u32[144,128]{1,0:T(1,128)}', space=vmem, size = 0x12000, scoped, tag = 'internal scratch']
  %s0 = inlined_call_operand.vmem [shape: f32[6,128], index: 0, kind: input, shape index: {}]
  %s1 = inlined_call_operand.vmem [shape: f32[128,256], index: 1, kind: input, shape index: {}]
  %s2 = inlined_call_operand.vmem [shape: f32[6,256], index: 2, kind: output, shape index: {}]
  %s3 = sld [smem:[#allocation0]]
  $region18: #{vnt_linear.1} parent=0
    _
  %s5 = ssub.s32 1, %s3
  %s6 = scalar_select 0, %s5, %s3
  // Predicated region
  $region2: #{vnt_linear.1} parent=0 // pred_check
    _
  $region3: #{vnt_linear.1} parent=0 // pred_check_branch
    %8 = sbr.rel (0) target = $region5
  $region4: #{vnt_linear.1} parent=0 // pred_region
    _
  $region5: #{vnt_linear.1} parent=0 // pred_fallthru
    _
  // Predicated region
  $region6: #{vnt_linear.1} parent=0 // pred_check
    _
  $region7: #{vnt_linear.1} parent=0 // pred_check_branch
    %10 = sbr.rel (0) target = $region9
  $region8: #{vnt_linear.1} parent=0 // pred_region
    _
  $region9: #{vnt_linear.1} parent=0 // pred_fallthru
    _
  %v11 = vld [vmem:[%s0] sm:$0x3f]
  %v12 = vld [vmem:[%s1] sm:$0xff]
  %v13 = vld [vmem:[%s1 + $0x8] sm:$0xff]
  %v14 = vld [vmem:[%s1 + $0x10] sm:$0xff]
  %v15 = vld [vmem:[%s1 + $0x18] sm:$0xff]
  %v16 = vld [vmem:[%s1 + $0x20] sm:$0xff]
  %v17 = vld [vmem:[%s1 + $0x28] sm:$0xff]
  %v18 = vld [vmem:[%s1 + $0x30] sm:$0xff]
  %v19 = vld [vmem:[%s1 + $0x38] sm:$0xff]
  %v20 = vld [vmem:[%s1 + $0x40] sm:$0xff]
  %v21 = vld [vmem:[%s1 + $0x48] sm:$0xff]
  %v22 = vld [vmem:[%s1 + $0x50] sm:$0xff]
  %v23 = vld [vmem:[%s1 + $0x58] sm:$0xff]
  %v24 = vld [vmem:[%s1 + $0x60] sm:$0xff]
  %v25 = vld [vmem:[%s1 + $0x68] sm:$0xff]
  %v26 = vld [vmem:[%s1 + $0x70] sm:$0xff]
  %v27 = vld [vmem:[%s1 + $0x78] sm:$0xff]
  %v28 = vld [vmem:[%s1 + $0x80] sm:$0xff]
  %v29 = vld [vmem:[%s1 + $0x88] sm:$0xff]
  %v30 = vld [vmem:[%s1 + $0x90] sm:$0xff]
  %v31 = vld [vmem:[%s1 + $0x98] sm:$0xff]
  %v32 = vld [vmem:[%s1 + $0xa0] sm:$0xff]
  %v33 = vld [vmem:[%s1 + $0xa8] sm:$0xff]
  %v34 = vld [vmem:[%s1 + $0xb0] sm:$0xff]
  %v35 = vld [vmem:[%s1 + $0xb8] sm:$0xff]
  %v36 = vld [vmem:[%s1 + $0xc0] sm:$0xff]
  %v37 = vld [vmem:[%s1 + $0xc8] sm:$0xff]
  %v38 = vld [vmem:[%s1 + $0xd0] sm:$0xff]
  %v39 = vld [vmem:[%s1 + $0xd8] sm:$0xff]
  %v40 = vld [vmem:[%s1 + $0xe0] sm:$0xff]
  %v41 = vld [vmem:[%s1 + $0xe8] sm:$0xff]
  %v42 = vld [vmem:[%s1 + $0xf0] sm:$0xff]
  %v43 = vld [vmem:[%s1 + $0xf8] sm:$0xff]
  %44 = vmatprep.subr.mxu0 %v43
  %45 = vmatpush1.msra.mxu0 %v42
  %46 = vmatprep.subr.mxu0 %v41
  %47 = vmatpush1.msra.mxu0 %v40
  %48 = vmatprep.subr.mxu0 %v39
  %49 = vmatpush1.msra.mxu0 %v38
  %50 = vmatprep.subr.mxu0 %v37
  %51 = vmatpush1.msra.mxu0 %v36
  %52 = vmatprep.subr.mxu0 %v35
  %53 = vmatpush1.msra.mxu0 %v34
  %54 = vmatprep.subr.mxu0 %v33
  %55 = vmatpush1.msra.mxu0 %v32
  %56 = vmatprep.subr.mxu0 %v31
  %57 = vmatpush1.msra.mxu0 %v30
  %58 = vmatprep.subr.mxu0 %v29
  %59 = vmatpush1.msra.mxu0 %v28
  %60 = vmatprep.subr.mxu0 %v27
  %61 = vmatpush1.msra.mxu0 %v26
  %62 = vmatprep.subr.mxu0 %v25
  %63 = vmatpush1.msra.mxu0 %v24
  %64 = vmatprep.subr.mxu0 %v23
  %65 = vmatpush1.msra.mxu0 %v22
  %66 = vmatprep.subr.mxu0 %v21
  %67 = vmatpush1.msra.mxu0 %v20
  %68 = vmatprep.subr.mxu0 %v19
  %69 = vmatpush1.msra.mxu0 %v18
  %70 = vmatprep.subr.mxu0 %v17
  %71 = vmatpush1.msra.mxu0 %v16
  %72 = vmatprep.subr.mxu0 %v15
  %73 = vmatpush1.msra.mxu0 %v14
  %74 = vmatprep.subr.mxu0 %v13
  %75 = vmatpush1.msra.mxu0 %v12
  %76 = vmatprep.subr.mxu0 0.0
  %77 = vmatpush2.msra.mxu0 0.0
  %78 = vmatprep.subr.mxu0 0.0
  %79 = vmatpush2.msra.mxu0 0.0
  %80 = vmatprep.subr.mxu0 0.0
  %81 = vmatpush2.msra.mxu0 0.0
  %82 = vmatprep.subr.mxu0 0.0
  %83 = vmatpush2.msra.mxu0 0.0
  %84 = vmatprep.subr.mxu0 0.0
  %85 = vmatpush2.msra.mxu0 0.0
  %86 = vmatprep.subr.mxu0 0.0
  %87 = vmatpush2.msra.mxu0 0.0
  %88 = vmatprep.subr.mxu0 0.0
  %89 = vmatpush2.msra.mxu0 0.0
  %90 = vmatprep.subr.mxu0 0.0
  %91 = vmatpush2.msra.mxu0 0.0
  %92 = vmatprep.subr.mxu0 0.0
  %93 = vmatpush2.msra.mxu0 0.0
  %94 = vmatprep.subr.mxu0 0.0
  %95 = vmatpush2.msra.mxu0 0.0
  %96 = vmatprep.subr.mxu0 0.0
  %97 = vmatpush2.msra.mxu0 0.0
  %98 = vmatprep.subr.mxu0 0.0
  %99 = vmatpush2.msra.mxu0 0.0
  %100 = vmatprep.subr.mxu0 0.0
  %101 = vmatpush2.msra.mxu0 0.0
  %102 = vmatprep.subr.mxu0 0.0
  %103 = vmatpush2.msra.mxu0 0.0
  %104 = vmatprep.subr.mxu0 0.0
  %105 = vmatpush2.msra.mxu0 0.0
  %106 = vmatprep.subr.mxu0 0.0
  %107 = vmatpush2.msra.mxu0 0.0
  %108 = vmatprep.mubr.f32.mxu0 0.0
  %109 = vmatmul.mubr.f32.gmra.mxu0 %v11
  %v110 = vpop.f32.mrf.mxu0
  %v111 = vadd.f32 0.0, %v110
  %v112 = vpop.f32.mrf.mxu0
  %v113 = vadd.f32 0.0, %v112
  %114 = vdwg.mxu0
  %115 = vst [vmem:[%s2] sm:$0x3f] %v111
  %116 = vst [vmem:[%s2 + $0x8] sm:$0x3f] %v113
  // Predicated region
  $region10: #{vnt_linear.1} parent=0 // pred_check
    _
  $region11: #{vnt_linear.1} parent=0 // pred_check_branch
    %118 = sbr.rel (0) target = $region13
  $region12: #{vnt_linear.1} parent=0 // pred_region
    _
  $region13: #{vnt_linear.1} parent=0 // pred_fallthru
    _
  // Predicated region
  $region14: #{vnt_linear.1} parent=0 // pred_check
    _
  $region15: #{vnt_linear.1} parent=0 // pred_check_branch
    %120 = sbr.rel (0) target = $region17
  $region16: #{vnt_linear.1} parent=0 // pred_region
    _
  $region17: #{vnt_linear.1} parent=0 // pred_fallthru
    _

</llo_original>
